<compile_context>
chip_gen: v7x
topology: tpu7x:2x2x1
jax: 0.10.0
libtpu: 0.0.40
codegen_flags: <defaults>
</compile_context>

<pallas_src>
import numpy as np
import jax
import jax.numpy as jnp
from jax.experimental import pallas as pl
from jax.experimental.pallas import tpu as pltpu

# ---------------------------------------------------------------------------
# Problem sizes (consistent with the module's __init__ / forward)
# ---------------------------------------------------------------------------
INPUT_DIM  = 4
HIDDEN_DIM = 32
DIAG_DIM   = 4                                   # diag_dim > 1 branch of PSD
OFF_DIAG   = DIAG_DIM * (DIAG_DIM - 1) // 2      # 6
FLAT       = DIAG_DIM * DIAG_DIM                 # 16 (flattened L / D)
EPSILON    = 1.0
INIT_GAIN  = 1.0

TILE       = 256                 # batch rows per grid step (lane dim, mult. of 128)

# Packed-layout constants (all row offsets are multiples of 8).
AB_HALF = DIAG_DIM * FLAT        # 64  rows of the "A" half (and of "B")
AB_ROWS = 2 * AB_HALF            # 128 rows of the fused LL^T projection WC
W2_OFF  = 0
W3_OFF  = HIDDEN_DIM             # 32
WC_OFF  = 2 * HIDDEN_DIM         # 64
W_ROWS  = WC_OFF + AB_ROWS       # 192
B1_OFF  = 0
B2_OFF  = HIDDEN_DIM             # 32
B3_OFF  = 2 * HIDDEN_DIM         # 64
BC_OFF  = 3 * HIDDEN_DIM         # 96
BE_OFF  = BC_OFF + AB_ROWS       # 224
B_ROWS  = BE_OFF + FLAT          # 240


# ---------------------------------------------------------------------------
# Pallas kernel
# ---------------------------------------------------------------------------
def psd_kernel(q_ref, w1_ref, w_ref, b_ref, d_ref):
    # q_ref : (INPUT_DIM, TILE)        q^T tile (batch along lanes, streams)
    # w1_ref: (HIDDEN_DIM, INPUT_DIM)  W1, torch layout            (resident)
    # w_ref : (W_ROWS, HIDDEN_DIM)     [W2 ; W3 ; WC]              (resident)
    # b_ref : (B_ROWS, 1)              [b1 ; b2 ; b3 ; bC ; eps]   (resident)
    # d_ref : (FLAT, TILE)             flattened D, transposed (lane-dense)
    q  = q_ref[...]
    w1 = w1_ref[...]

    # Layer 1: K = 4 is too small to earn an MXU push; 4 broadcast FMAs on
    # the VPU (hidden under the tanh / EUP) avoid a padded matmul entirely.
    z = b_ref[B1_OFF:B1_OFF + HIDDEN_DIM] + w1[:, 0:1] * q[0:1, :]
    for d in range(1, INPUT_DIM):
        z = z + w1[:, d:d + 1] * q[d:d + 1, :]
    h = jnp.tanh(z)

    # Layers 2 / 3: (32, 32) @ (32, TILE) -- batch fills the MXU lane dim.
    h = jnp.tanh(
        jnp.dot(w_ref[W2_OFF:W2_OFF + HIDDEN_DIM, :], h,
                preferred_element_type=jnp.float32)
        + b_ref[B2_OFF:B2_OFF + HIDDEN_DIM])
    h = jnp.tanh(
        jnp.dot(w_ref[W3_OFF:W3_OFF + HIDDEN_DIM, :], h,
                preferred_element_type=jnp.float32)
        + b_ref[B3_OFF:B3_OFF + HIDDEN_DIM])

    # Fused linear4 + placement + LL^T gathers (all folded into WC / bC):
    #   c[      16*k + 4*i + j] = L[i, k]   ("A" half, rows   0:64)
    #   c[ 64 + 16*k + 4*i + j] = L[j, k]   ("B" half, rows  64:128)
    # so D_flat[4*i + j] = sum_k A_k * B_k  -- no reshapes, no tiny einsum,
    # only vreg-aligned sublane slices and full-width VPU multiplies/adds.
    c = (jnp.dot(w_ref[WC_OFF:WC_OFF + AB_ROWS, :], h,
                 preferred_element_type=jnp.float32)
         + b_ref[BC_OFF:BC_OFF + AB_ROWS])
    prod = c[:AB_HALF, :] * c[AB_HALF:, :]               # (64, TILE)

    d = prod[0:FLAT, :]
    for k in range(1, DIAG_DIM):
        d = d + prod[k * FLAT:(k + 1) * FLAT, :]
    d_ref[...] = d + b_ref[BE_OFF:BE_OFF + FLAT]          # + epsilon * I


def psd_forward(q, w1, w_pack, b_pack, *, tile=TILE):
    """q: (N, INPUT_DIM) float32  ->  D: (N, DIAG_DIM, DIAG_DIM) float32."""
    n = q.shape[0]
    n_pad = ((n + tile - 1) // tile) * tile
    q_t = q.T                                  # layout plumbing, not compute
    if n_pad != n:
        q_t = jnp.pad(q_t, ((0, 0), (0, n_pad - n)))

    d_t = pl.pallas_call(
        psd_kernel,
        out_shape=jax.ShapeDtypeStruct((FLAT, n_pad), jnp.float32),
        grid=(n_pad // tile,),
        in_specs=[
            pl.BlockSpec((INPUT_DIM, tile), lambda i: (0, i)),        # streams
            pl.BlockSpec((HIDDEN_DIM, INPUT_DIM), lambda i: (0, 0)),  # resident
            pl.BlockSpec((W_ROWS, HIDDEN_DIM), lambda i: (0, 0)),     # resident
            pl.BlockSpec((B_ROWS, 1), lambda i: (0, 0)),              # resident
        ],
        out_specs=pl.BlockSpec((FLAT, tile), lambda i: (0, i)),
        compiler_params=pltpu.CompilerParams(
            dimension_semantics=("parallel",)),
    )(q_t, w1, w_pack, b_pack)

    return d_t[:, :n].T.reshape(n, DIAG_DIM, DIAG_DIM)


# ---------------------------------------------------------------------------
# Parameter construction / packing (wrapper side, one-time)
# ---------------------------------------------------------------------------
def make_params(key):
    """Weights in torch layout (out_dim, in_dim), orthogonal init."""
    ortho = jax.nn.initializers.orthogonal(scale=INIT_GAIN)
    ks = jax.random.split(key, 8)

    def linear(kw, kb, in_dim, out_dim):
        w = ortho(kw, (out_dim, in_dim), jnp.float32)
        bound = 1.0 / np.sqrt(in_dim)
        b = jax.random.uniform(kb, (out_dim,), jnp.float32, -bound, bound)
        return w, b

    w1, b1 = linear(ks[0], ks[1], INPUT_DIM,  HIDDEN_DIM)
    w2, b2 = linear(ks[2], ks[3], HIDDEN_DIM, HIDDEN_DIM)
    w3, b3 = linear(ks[4], ks[5], HIDDEN_DIM, HIDDEN_DIM)
    w4, b4 = linear(ks[6], ks[7], HIDDEN_DIM, DIAG_DIM + OFF_DIAG)
    return (w1, b1, w2, b2, w3, b3, w4, b4)


def make_placement():
    """(diag+off_diag, d*d) 0/1 matrix mapping linear4 output -> flattened L
    (diag_embed positions + tril scatter, mirroring the torch forward)."""
    P = np.zeros((DIAG_DIM + OFF_DIAG, FLAT), dtype=np.float32)
    for i in range(DIAG_DIM):
        P[i, i * DIAG_DIM + i] = 1.0
    tril_i, tril_j = np.tril_indices(DIAG_DIM, k=-1)
    flat_ind = np.ravel_multi_index((tril_i, tril_j), (DIAG_DIM, DIAG_DIM))
    for t, f in enumerate(flat_ind):
        P[DIAG_DIM + t, f] = 1.0
    return jnp.asarray(P)


def pack_inputs(params, placement):
    """Fold placement and the LL^T (i,k)/(j,k) gathers into the final weight
    block; pack [W2;W3;WC] into one (192,32) array and all bias columns plus
    the epsilon diagonal into one (240,1) array (offsets multiples of 8)."""
    w1, b1, w2, b2, w3, b3, w4, b4 = params
    w4p = placement.T @ w4                          # (16, 32): flattened-L rows
    b4p = placement.T @ b4                          # (16,)

    idx_a = np.empty(AB_HALF, dtype=np.int32)
    idx_b = np.empty(AB_HALF, dtype=np.int32)
    for k in range(DIAG_DIM):
        for i in range(DIAG_DIM):
            for j in range(DIAG_DIM):
                m = k * FLAT + i * DIAG_DIM + j
                idx_a[m] = i * DIAG_DIM + k          # -> L[i, k]
                idx_b[m] = j * DIAG_DIM + k          # -> L[j, k]
    wc = jnp.concatenate([w4p[idx_a], w4p[idx_b]], axis=0)    # (128, 32)
    bc = jnp.concatenate([b4p[idx_a], b4p[idx_b]], axis=0)    # (128,)

    eps_col = np.zeros(FLAT, dtype=np.float32)
    eps_col[np.arange(DIAG_DIM) * (DIAG_DIM + 1)] = EPSILON

    w_pack = jnp.concatenate([w2, w3, wc], axis=0)            # (192, 32)
    b_pack = jnp.concatenate(
        [b1, b2, b3, bc, jnp.asarray(eps_col)], axis=0).reshape(B_ROWS, 1)
    return w1, w_pack, b_pack


# ---------------------------------------------------------------------------
# Pure-JAX reference (mirrors the PyTorch forward)
# ---------------------------------------------------------------------------
def psd_reference(q, params, placement):
    w1, b1, w2, b2, w3, b3, w4, b4 = params
    h = jnp.tanh(q @ w1.T + b1)
    h = jnp.tanh(h @ w2.T + b2)
    h = jnp.tanh(h @ w3.T + b3)
    out4 = h @ w4.T + b4
    L = (out4 @ placement).reshape(-1, DIAG_DIM, DIAG_DIM)
    D = jnp.einsum('bik,bjk->bij', L, L)
    return D + EPSILON * jnp.eye(DIAG_DIM, dtype=jnp.float32)[None]


if __name__ == "__main__":
    key = jax.random.PRNGKey(0)
    k_param, k_q = jax.random.split(key)

    params = make_params(k_param)
    placement = make_placement()
    w1, w_pack, b_pack = pack_inputs(params, placement)

    # A stacked batch (2 grid steps) and the module's natural tiny batch
    # (exercises the pad-and-slice path).
    for n_rows in (2 * TILE, 8):
        q = jax.random.normal(k_q, (n_rows, INPUT_DIM), jnp.float32)
        D = jax.block_until_ready(psd_forward(q, w1, w_pack, b_pack))
        D_ref = psd_reference(q, params, placement)
        assert D.shape == (n_rows, DIAG_DIM, DIAG_DIM)
        np.testing.assert_allclose(np.asarray(D), np.asarray(D_ref),
                                   rtol=1e-5, atol=1e-4)
    print("KERNEL_OK")
</pallas_src>

<mosaic_0001>
module attributes {stable_mosaic.version = 11 : i64} {
  func.func @psd_kernel(%arg0: i32, %arg1: memref<4x256xf32, #tpu.memory_space<vmem>>, %arg2: memref<32x4xf32, #tpu.memory_space<vmem>>, %arg3: memref<192x32xf32, #tpu.memory_space<vmem>>, %arg4: memref<240x1xf32, #tpu.memory_space<vmem>>, %arg5: memref<16x256xf32, #tpu.memory_space<vmem>>) attributes {dimension_semantics = [#tpu.dimension_semantics<parallel>], iteration_bounds = array<i64: 2>, scalar_prefetch = 0 : i64, scratch_operands = 0 : i64, tpu.core_type = #tpu.core_type<tc>, window_params = [{transform_indices = @transform_0, window_bounds = array<i64: 4, 256>}, {pipeline_mode = #tpu.pipeline_mode<synchronous>, transform_indices = @transform_1, window_bounds = array<i64: 32, 4>}, {pipeline_mode = #tpu.pipeline_mode<synchronous>, transform_indices = @transform_2, window_bounds = array<i64: 192, 32>}, {pipeline_mode = #tpu.pipeline_mode<synchronous>, transform_indices = @transform_3, window_bounds = array<i64: 240, 1>}, {transform_indices = @transform_4, window_bounds = array<i64: 16, 256>}]} {
    %c0 = arith.constant 0 : index
    %c0_0 = arith.constant 0 : index
    %0 = vector.load %arg1[%c0, %c0_0] : memref<4x256xf32, #tpu.memory_space<vmem>>, vector<4x256xf32>
    %c0_1 = arith.constant 0 : index
    %c0_2 = arith.constant 0 : index
    %1 = vector.load %arg2[%c0_1, %c0_2] : memref<32x4xf32, #tpu.memory_space<vmem>>, vector<32x4xf32>
    %c0_3 = arith.constant 0 : index
    %c0_4 = arith.constant 0 : index
    %2 = vector.load %arg4[%c0_3, %c0_4] : memref<240x1xf32, #tpu.memory_space<vmem>>, vector<32x1xf32>
    %3 = vector.extract_strided_slice %1 {offsets = [0, 0], sizes = [32, 1], strides = [1, 1]} : vector<32x4xf32> to vector<32x1xf32>
    %4 = vector.extract_strided_slice %0 {offsets = [0, 0], sizes = [1, 256], strides = [1, 1]} : vector<4x256xf32> to vector<1x256xf32>
    %5 = vector.broadcast %3 : vector<32x1xf32> to vector<32x256xf32>
    %6 = vector.broadcast %4 : vector<1x256xf32> to vector<32x256xf32>
    %7 = arith.mulf %5, %6 : vector<32x256xf32>
    %8 = vector.broadcast %2 : vector<32x1xf32> to vector<32x256xf32>
    %9 = arith.addf %8, %7 : vector<32x256xf32>
    %10 = vector.extract_strided_slice %1 {offsets = [0, 1], sizes = [32, 1], strides = [1, 1]} : vector<32x4xf32> to vector<32x1xf32>
    %11 = vector.extract_strided_slice %0 {offsets = [1, 0], sizes = [1, 256], strides = [1, 1]} : vector<4x256xf32> to vector<1x256xf32>
    %12 = vector.broadcast %10 : vector<32x1xf32> to vector<32x256xf32>
    %13 = vector.broadcast %11 : vector<1x256xf32> to vector<32x256xf32>
    %14 = arith.mulf %12, %13 : vector<32x256xf32>
    %15 = arith.addf %9, %14 : vector<32x256xf32>
    %16 = vector.extract_strided_slice %1 {offsets = [0, 2], sizes = [32, 1], strides = [1, 1]} : vector<32x4xf32> to vector<32x1xf32>
    %17 = vector.extract_strided_slice %0 {offsets = [2, 0], sizes = [1, 256], strides = [1, 1]} : vector<4x256xf32> to vector<1x256xf32>
    %18 = vector.broadcast %16 : vector<32x1xf32> to vector<32x256xf32>
    %19 = vector.broadcast %17 : vector<1x256xf32> to vector<32x256xf32>
    %20 = arith.mulf %18, %19 : vector<32x256xf32>
    %21 = arith.addf %15, %20 : vector<32x256xf32>
    %22 = vector.extract_strided_slice %1 {offsets = [0, 3], sizes = [32, 1], strides = [1, 1]} : vector<32x4xf32> to vector<32x1xf32>
    %23 = vector.extract_strided_slice %0 {offsets = [3, 0], sizes = [1, 256], strides = [1, 1]} : vector<4x256xf32> to vector<1x256xf32>
    %24 = vector.broadcast %22 : vector<32x1xf32> to vector<32x256xf32>
    %25 = vector.broadcast %23 : vector<1x256xf32> to vector<32x256xf32>
    %26 = arith.mulf %24, %25 : vector<32x256xf32>
    %27 = arith.addf %21, %26 : vector<32x256xf32>
    %28 = math.tanh %27 : vector<32x256xf32>
    %c0_5 = arith.constant 0 : index
    %c0_6 = arith.constant 0 : index
    %29 = vector.load %arg3[%c0_5, %c0_6] : memref<192x32xf32, #tpu.memory_space<vmem>>, vector<32x32xf32>
    %cst = arith.constant dense<0.000000e+00> : vector<32x256xf32>
    %30 = tpu.matmul %29, %28, %cst {dimension_numbers = #tpu.dot_dimension_numbers<[1], [0], [0], [1], [0, 0, 1, 1], [], []>} : vector<32x32xf32>, vector<32x256xf32>, vector<32x256xf32> -> vector<32x256xf32>
    %c32 = arith.constant 32 : index
    %c0_7 = arith.constant 0 : index
    %31 = vector.load %arg4[%c32, %c0_7] : memref<240x1xf32, #tpu.memory_space<vmem>>, vector<32x1xf32>
    %32 = vector.broadcast %31 : vector<32x1xf32> to vector<32x256xf32>
    %33 = arith.addf %30, %32 : vector<32x256xf32>
    %34 = math.tanh %33 : vector<32x256xf32>
    %c32_8 = arith.constant 32 : index
    %c0_9 = arith.constant 0 : index
    %35 = vector.load %arg3[%c32_8, %c0_9] : memref<192x32xf32, #tpu.memory_space<vmem>>, vector<32x32xf32>
    %cst_10 = arith.constant dense<0.000000e+00> : vector<32x256xf32>
    %36 = tpu.matmul %35, %34, %cst_10 {dimension_numbers = #tpu.dot_dimension_numbers<[1], [0], [0], [1], [0, 0, 1, 1], [], []>} : vector<32x32xf32>, vector<32x256xf32>, vector<32x256xf32> -> vector<32x256xf32>
    %c64 = arith.constant 64 : index
    %c0_11 = arith.constant 0 : index
    %37 = vector.load %arg4[%c64, %c0_11] : memref<240x1xf32, #tpu.memory_space<vmem>>, vector<32x1xf32>
    %38 = vector.broadcast %37 : vector<32x1xf32> to vector<32x256xf32>
    %39 = arith.addf %36, %38 : vector<32x256xf32>
    %40 = math.tanh %39 : vector<32x256xf32>
    %c64_12 = arith.constant 64 : index
    %c0_13 = arith.constant 0 : index
    %41 = vector.load %arg3[%c64_12, %c0_13] : memref<192x32xf32, #tpu.memory_space<vmem>>, vector<128x32xf32>
    %cst_14 = arith.constant dense<0.000000e+00> : vector<128x256xf32>
    %42 = tpu.matmul %41, %40, %cst_14 {dimension_numbers = #tpu.dot_dimension_numbers<[1], [0], [0], [1], [0, 0, 1, 1], [], []>} : vector<128x32xf32>, vector<32x256xf32>, vector<128x256xf32> -> vector<128x256xf32>
    %c96 = arith.constant 96 : index
    %c0_15 = arith.constant 0 : index
    %43 = vector.load %arg4[%c96, %c0_15] : memref<240x1xf32, #tpu.memory_space<vmem>>, vector<128x1xf32>
    %44 = vector.broadcast %43 : vector<128x1xf32> to vector<128x256xf32>
    %45 = arith.addf %42, %44 : vector<128x256xf32>
    %46 = vector.extract_strided_slice %45 {offsets = [0, 0], sizes = [64, 256], strides = [1, 1]} : vector<128x256xf32> to vector<64x256xf32>
    %47 = vector.extract_strided_slice %45 {offsets = [64, 0], sizes = [64, 256], strides = [1, 1]} : vector<128x256xf32> to vector<64x256xf32>
    %48 = arith.mulf %46, %47 : vector<64x256xf32>
    %49 = vector.extract_strided_slice %48 {offsets = [0, 0], sizes = [16, 256], strides = [1, 1]} : vector<64x256xf32> to vector<16x256xf32>
    %50 = vector.extract_strided_slice %48 {offsets = [16, 0], sizes = [16, 256], strides = [1, 1]} : vector<64x256xf32> to vector<16x256xf32>
    %51 = arith.addf %49, %50 : vector<16x256xf32>
    %52 = vector.extract_strided_slice %48 {offsets = [32, 0], sizes = [16, 256], strides = [1, 1]} : vector<64x256xf32> to vector<16x256xf32>
    %53 = arith.addf %51, %52 : vector<16x256xf32>
    %54 = vector.extract_strided_slice %48 {offsets = [48, 0], sizes = [16, 256], strides = [1, 1]} : vector<64x256xf32> to vector<16x256xf32>
    %55 = arith.addf %53, %54 : vector<16x256xf32>
    %c224 = arith.constant 224 : index
    %c0_16 = arith.constant 0 : index
    %56 = vector.load %arg4[%c224, %c0_16] : memref<240x1xf32, #tpu.memory_space<vmem>>, vector<16x1xf32>
    %57 = vector.broadcast %56 : vector<16x1xf32> to vector<16x256xf32>
    %58 = arith.addf %55, %57 : vector<16x256xf32>
    %c0_17 = arith.constant 0 : index
    %c0_18 = arith.constant 0 : index
    %59 = vector.load %arg5[%c0_17, %c0_18] : memref<16x256xf32, #tpu.memory_space<vmem>>, vector<16x256xf32>
    tpu.vector_store %arg5[%c0_17, %c0_18], %58 {strides = array<i32>} : memref<16x256xf32, #tpu.memory_space<vmem>>, vector<16x256xf32>,
    return
  }
  func.func @transform_0(%arg0: i32) -> (i32, i32) {
    %c0_i32 = arith.constant 0 : i32
    %c0_i32_0 = arith.constant 0 : i32
    return %c0_i32, %arg0 : i32, i32
  }
  func.func @transform_1(%arg0: i32) -> (i32, i32) {
    %c0_i32 = arith.constant 0 : i32
    %c0_i32_0 = arith.constant 0 : i32
    %c0_i32_1 = arith.constant 0 : i32
    return %c0_i32, %c0_i32_0 : i32, i32
  }
  func.func @transform_2(%arg0: i32) -> (i32, i32) {
    %c0_i32 = arith.constant 0 : i32
    %c0_i32_0 = arith.constant 0 : i32
    %c0_i32_1 = arith.constant 0 : i32
    return %c0_i32, %c0_i32_0 : i32, i32
  }
  func.func @transform_3(%arg0: i32) -> (i32, i32) {
    %c0_i32 = arith.constant 0 : i32
    %c0_i32_0 = arith.constant 0 : i32
    %c0_i32_1 = arith.constant 0 : i32
    return %c0_i32, %c0_i32_0 : i32, i32
  }
  func.func @transform_4(%arg0: i32) -> (i32, i32) {
    %c0_i32 = arith.constant 0 : i32
    %c0_i32_0 = arith.constant 0 : i32
    return %c0_i32, %arg0 : i32, i32
  }
}

</mosaic_0001>

<llo_original>
// kernel: tpu_custom_call.1
$region0: #{tpu_custom_call.1}
  #allocation0 [shape = 'u32[]', space=smem, size = 0x4, offset = 0x4, fixed_abs, tag = 'smem constant byte address 0x4 - core index']
  #allocation1 [shape = 'u32[144,128]{1,0:T(1,128)}', space=vmem, size = 0x12000, scoped, tag = 'internal scratch']
  %s0 = inlined_call_operand.vmem [shape: f32[4,512], index: 0, kind: input, shape index: {}]
  %s1 = inlined_call_operand.vmem [shape: f32[32,4], index: 1, kind: input, shape index: {}]
  %s2 = inlined_call_operand.vmem [shape: f32[192,32], index: 2, kind: input, shape index: {}]
  %s3 = inlined_call_operand.vmem [shape: f32[240,1], index: 3, kind: input, shape index: {}]
  %s4 = inlined_call_operand.hbm [shape: f32[16,512], index: 4, kind: output, shape index: {}]
  %s5 = sld [smem:[#allocation0]]
  $region49: #{tpu_custom_call.1} parent=0
    _
  %s7 = ssub.s32 1, %s5
  %s8 = scalar_select 0, %s7, %s5
  $region1: #{tpu_custom_call.1} parent=0
    #allocation2 [shape = 'u8[32768]{0}', space=vmem, size = 0x8000, scoped, tag = 'output window, operand 0']
    #allocation3 [shape = 's32[2]{0}', space=sflag, size = 0x8, scoped, tag = 'scoped memory for tpu_custom_call.1']
    %9 = vsyncpa [#allocation3], 0
    %s10 = scalar_lea.sflag [#allocation3], 1
    %11 = vsyncpa %s10, 0
    loop: start=0, step=1, limit=4
    $region2: #{tpu_custom_call.1} parent=1 // loop_pre_header
      _
    $region3: #{tpu_custom_call.1} parent=1 // loop_header
      %s13 = sphi 0, %s17
      %p14 = scmp.ge.s32.totalorder %s13, 4
      %s23 = sphi 0, %s25
      %s26 = sphi 0, %s23
      %s27 = sphi 0, %s26
      %s43 = sphi 0, %s27
      %s47 = sphi 0, %s47
      %s49 = sphi 0, %s47
      %s50 = sphi 0, %s49
      %s64 = sphi 0, %s50
      %s68 = sphi 0, %s68
      %s70 = sphi 0, %s68
      %s71 = sphi 0, %s70
      %s85 = sphi 0, %s71
      %s89 = sphi 0, %s89
      %s91 = sphi 0, %s89
      %s92 = sphi 0, %s91
      %s106 = sphi 0, %s92
      %s112 = sphi 0, %s114
      %s115 = sphi 0, %s112
      %s116 = sphi 0, %s115
      %s132 = sphi 0, %s116
    $region4: #{tpu_custom_call.1} parent=1 // loop_header_branch
      %16 = sbr.rel (%p14) target = $region8
    $region5: #{tpu_custom_call.1} parent=1 // loop_body
      %s18 = ssub.s32 %s13, 1
      %s19 = ssub.s32 %s13, 2
      %s20 = sadd.s32 %s13, 1
      %s21 = ssub.s32 %s13, %s20
      %p22 = scmp.eq.s32.totalorder %s21, 0
      %s24 = sadd.s32 %s23, 1
      %s25 = scalar_select %p22, %s23, %s24
      %p28 = pneg %p22
      %p29 = scmp.eq.s32.totalorder %s13, 1
      %p30 = por %p28, %p29
      %p31 = scmp.ne.s32.totalorder %s23, %s26
      %p32 = scmp.eq.s32.totalorder %s13, 0
      %p33 = por %p31, %p32
      %p34 = scmp.ne.s32.totalorder %s23, %s26
      %p35 = scmp.eq.s32.totalorder %s18, 1
      %p36 = por %p34, %p35
      %p37 = scmp.ne.s32.totalorder %s26, %s27
      %p38 = scmp.eq.s32.totalorder %s18, 0
      %p39 = por %p37, %p38
      %p40 = scmp.ne.s32.totalorder %s26, %s27
      %p41 = scmp.eq.s32.totalorder %s19, 1
      %p42 = por %p40, %p41
      %p44 = scmp.ne.s32.totalorder %s27, %s43
      %p45 = scmp.eq.s32.totalorder %s19, 0
      %p46 = por %p44, %p45
      %s48 = sadd.s32 %s47, 1
      %p51 = scmp.eq.s32.totalorder %s13, 1
      %p52 = scmp.ne.s32.totalorder %s47, %s49
      %p53 = scmp.eq.s32.totalorder %s13, 0
      %p54 = por %p52, %p53
      %p55 = scmp.ne.s32.totalorder %s47, %s49
      %p56 = scmp.eq.s32.totalorder %s18, 1
      %p57 = por %p55, %p56
      %p58 = scmp.ne.s32.totalorder %s49, %s50
      %p59 = scmp.eq.s32.totalorder %s18, 0
      %p60 = por %p58, %p59
      %p61 = scmp.ne.s32.totalorder %s49, %s50
      %p62 = scmp.eq.s32.totalorder %s19, 1
      %p63 = por %p61, %p62
      %p65 = scmp.ne.s32.totalorder %s50, %s64
      %p66 = scmp.eq.s32.totalorder %s19, 0
      %p67 = por %p65, %p66
      %s69 = sadd.s32 %s68, 1
      %p72 = scmp.eq.s32.totalorder %s13, 1
      %p73 = scmp.ne.s32.totalorder %s68, %s70
      %p74 = scmp.eq.s32.totalorder %s13, 0
      %p75 = por %p73, %p74
      %p76 = scmp.ne.s32.totalorder %s68, %s70
      %p77 = scmp.eq.s32.totalorder %s18, 1
      %p78 = por %p76, %p77
      %p79 = scmp.ne.s32.totalorder %s70, %s71
      %p80 = scmp.eq.s32.totalorder %s18, 0
      %p81 = por %p79, %p80
      %p82 = scmp.ne.s32.totalorder %s70, %s71
      %p83 = scmp.eq.s32.totalorder %s19, 1
      %p84 = por %p82, %p83
      %p86 = scmp.ne.s32.totalorder %s71, %s85
      %p87 = scmp.eq.s32.totalorder %s19, 0
      %p88 = por %p86, %p87
      %s90 = sadd.s32 %s89, 1
      %p93 = scmp.eq.s32.totalorder %s13, 1
      %p94 = scmp.ne.s32.totalorder %s89, %s91
      %p95 = scmp.eq.s32.totalorder %s13, 0
      %p96 = por %p94, %p95
      %p97 = scmp.ne.s32.totalorder %s89, %s91
      %p98 = scmp.eq.s32.totalorder %s18, 1
      %p99 = por %p97, %p98
      %p100 = scmp.ne.s32.totalorder %s91, %s92
      %p101 = scmp.eq.s32.totalorder %s18, 0
      %p102 = por %p100, %p101
      %p103 = scmp.ne.s32.totalorder %s91, %s92
      %p104 = scmp.eq.s32.totalorder %s19, 1
      %p105 = por %p103, %p104
      %p107 = scmp.ne.s32.totalorder %s92, %s106
      %p108 = scmp.eq.s32.totalorder %s19, 0
      %p109 = por %p107, %p108
      %s110 = ssub.s32 %s13, %s20
      %p111 = scmp.eq.s32.totalorder %s110, 0
      %s113 = sadd.s32 %s112, 1
      %s114 = scalar_select %p111, %s112, %s113
      %p117 = pneg %p111
      %p118 = scmp.eq.s32.totalorder %s13, 1
      %p119 = por %p117, %p118
      %p120 = scmp.ne.s32.totalorder %s112, %s115
      %p121 = scmp.eq.s32.totalorder %s13, 0
      %p122 = por %p120, %p121
      %p123 = scmp.ne.s32.totalorder %s112, %s115
      %p124 = scmp.eq.s32.totalorder %s18, 1
      %p125 = por %p123, %p124
      %p126 = scmp.ne.s32.totalorder %s115, %s116
      %p127 = scmp.eq.s32.totalorder %s18, 0
      %p128 = por %p126, %p127
      %p129 = scmp.ne.s32.totalorder %s115, %s116
      %p130 = scmp.eq.s32.totalorder %s19, 1
      %p131 = por %p129, %p130
      %p133 = scmp.ne.s32.totalorder %s116, %s132
      %p134 = scmp.eq.s32.totalorder %s19, 0
      %p135 = por %p133, %p134
      %p136 = scmp.le.s32.totalorder 1, %s13
      %p137 = scmp.lt.s32.totalorder %s13, 3
      %p138 = pnand %p136, %p137
      %p139 = pneg %p138
      // Predicated region
      $region9: #{tpu_custom_call.1} parent=5 // pred_check
        _
      $region10: #{tpu_custom_call.1} parent=5 // pred_check_branch
        %141 = sbr.rel (%p138) target = $region12
      $region11: #{tpu_custom_call.1} parent=5 // pred_region
        %s142 = ssub.s32 %s13, 1
        // Predicated region
        $region13: #{tpu_custom_call.1} parent=11 // pred_check
          %p143 = pneg %p60
        $region14: #{tpu_custom_call.1} parent=11 // pred_check_branch
          %145 = sbr.rel (%p143) target = $region16
        $region15: #{tpu_custom_call.1} parent=11 // pred_region
          _
        $region16: #{tpu_custom_call.1} parent=11 // pred_fallthru
          _
        // Predicated region
        $region17: #{tpu_custom_call.1} parent=11 // pred_check
          %p146 = pneg %p81
        $region18: #{tpu_custom_call.1} parent=11 // pred_check_branch
          %148 = sbr.rel (%p146) target = $region20
        $region19: #{tpu_custom_call.1} parent=11 // pred_region
          _
        $region20: #{tpu_custom_call.1} parent=11 // pred_fallthru
          _
        // Predicated region
        $region21: #{tpu_custom_call.1} parent=11 // pred_check
          %p149 = pneg %p102
        $region22: #{tpu_custom_call.1} parent=11 // pred_check_branch
          %151 = sbr.rel (%p149) target = $region24
        $region23: #{tpu_custom_call.1} parent=11 // pred_region
          _
        $region24: #{tpu_custom_call.1} parent=11 // pred_fallthru
          _
      $region12: #{tpu_custom_call.1} parent=5 // pred_fallthru
        _
      %p152 = scmp.lt.s32.totalorder %s13, 2
      // Predicated region
      $region25: #{tpu_custom_call.1} parent=5 // pred_check
        %p153 = pneg %p152
      $region26: #{tpu_custom_call.1} parent=5 // pred_check_branch
        %155 = sbr.rel (%p153) target = $region28
      $region27: #{tpu_custom_call.1} parent=5 // pred_region
        // Predicated region
        $region29: #{tpu_custom_call.1} parent=27 // pred_check
          %p156 = pneg %p33
        $region30: #{tpu_custom_call.1} parent=27 // pred_check_branch
          %158 = sbr.rel (%p156) target = $region32
        $region31: #{tpu_custom_call.1} parent=27 // pred_region
          %s159 = smul.u32 2, %s13
          %p160 = scmp.lt.s32.totalorder %s159, 3
          %s161 = scalar_select %p160, %s159, 3
          %s162 = smul.addr %s161, 4
          %s163 = scalar_lea.vmem %s0, %s162
          %s164 = smul.u32 2, %s13
        $region32: #{tpu_custom_call.1} parent=27 // pred_fallthru
          _
      $region28: #{tpu_custom_call.1} parent=5 // pred_fallthru
        _
      %p165 = scmp.le.s32.totalorder 1, %s13
      %p166 = scmp.lt.s32.totalorder %s13, 3
      %p167 = pnand %p165, %p166
      %p168 = pneg %p167
      // Predicated region
      $region33: #{tpu_custom_call.1} parent=5 // pred_check
        _
      $region34: #{tpu_custom_call.1} parent=5 // pred_check_branch
        %170 = sbr.rel (%p167) target = $region36
      $region35: #{tpu_custom_call.1} parent=5 // pred_region
        %s171 = ssub.s32 %s13, 1
        %s172 = smul.u32 2, %s18
        %p173 = scmp.lt.s32.totalorder %s172, 3
        %s174 = scalar_select %p173, %s172, 3
        %s175 = smul.addr %s174, 4
        %s176 = scalar_lea.vmem %s0, %s175
        %p177 = pneg %p39
        %p178 = pneg %p36
        %p179 = pneg %p60
        %p180 = pneg %p57
        %p181 = pneg %p81
        %p182 = pneg %p78
        %p183 = pneg %p102
        %p184 = pneg %p99
        %p185 = pneg %p128
        %p186 = pneg %p125
        %s187 = sand.u32 %s115, 1
        %s188 = scalar_lea.sflag [#allocation3], %s187
        %s189 = sand.u32 %s115, 1
        %s190 = smul.addr %s189, 32
        %s191 = scalar_lea.vmem [#allocation2], %s190
        %s192 = smul.u32 2, %s18
        %p193 = scmp.lt.s32.totalorder %s192, 3
        %s194 = scalar_select %p193, %s192, 3
        %s195 = smul.addr %s194, 4
        %s196 = scalar_lea.vmem %s0, %s195
        %s197 = smul.u32 2, %s18
        %s198 = smul.u32 2, %s18
        %v199 = vld [vmem:[%s196] sm:$0xff]
        %v200 = vld [vmem:[%s1] sm:$0xff]
        %v201 = vld [vmem:[%s1 + $0x8] sm:$0xff]
        %v202 = vld [vmem:[%s1 + $0x10] sm:$0xff]
        %v203 = vld [vmem:[%s1 + $0x18] sm:$0xff]
        %v204 = vld [vmem:[%s3] sm:$0xff]
        %v205 = vld [vmem:[%s3 + $0x8] sm:$0xff]
        %v206 = vld [vmem:[%s3 + $0x10] sm:$0xff]
        %v207 = vld [vmem:[%s3 + $0x18] sm:$0xff]
        %209 = vset.pattern.permute.xlu0 0
        %210 = vperm.xlu0 %209, %v200
        %v211 = vpop.permute.xlu0 %210
        %214 = vset.pattern.permute.xlu0 0
        %215 = vperm.xlu0 %214, %v201
        %v216 = vpop.permute.xlu0 %215
        %219 = vset.pattern.permute.xlu0 0
        %220 = vperm.xlu0 %219, %v202
        %v221 = vpop.permute.xlu0 %220
        %224 = vset.pattern.permute.xlu0 0
        %225 = vperm.xlu0 %224, %v203
        %v226 = vpop.permute.xlu0 %225
        %v229 = vlaneseq
        %v230 = vshrl.u32 %v229, 7
        %v231 = vsub.s32 0, %v230
        %v232 = vrot.slane %v199, %v231
        %v233 = vlaneseq
        %v234 = vshrl.u32 %v233, 7
        %v235 = vsub.s32 4, %v234
        %v236 = vrot.slane %v199, %v235
        %v239 = vlaneseq
        %v240 = vshrl.u32 %v239, 7
        %v241 = vsub.s32 0, %v240
        %v242 = vrot.slane %v232, %v241
        %v243 = vlaneseq
        %v244 = vshrl.u32 %v243, 7
        %v245 = vsub.s32 0, %v244
        %v246 = vrot.slane %v236, %v245
        %v247 = vmul.f32 %v211, %v242
        %v248 = vmul.f32 %v211, %v246
        %v249 = vmul.f32 %v216, %v242
        %v250 = vmul.f32 %v216, %v246
        %v251 = vmul.f32 %v221, %v242
        %v252 = vmul.f32 %v221, %v246
        %v253 = vmul.f32 %v226, %v242
        %v254 = vmul.f32 %v226, %v246
        %256 = vset.pattern.permute.xlu0 0
        %257 = vperm.xlu0 %256, %v204
        %v258 = vpop.permute.xlu0 %257
        %261 = vset.pattern.permute.xlu0 0
        %262 = vperm.xlu0 %261, %v205
        %v263 = vpop.permute.xlu0 %262
        %266 = vset.pattern.permute.xlu0 0
        %267 = vperm.xlu0 %266, %v206
        %v268 = vpop.permute.xlu0 %267
        %271 = vset.pattern.permute.xlu0 0
        %272 = vperm.xlu0 %271, %v207
        %v273 = vpop.permute.xlu0 %272
        %v275 = vadd.f32 %v258, %v247
        %v276 = vadd.f32 %v258, %v248
        %v277 = vadd.f32 %v263, %v249
        %v278 = vadd.f32 %v263, %v250
        %v279 = vadd.f32 %v268, %v251
        %v280 = vadd.f32 %v268, %v252
        %v281 = vadd.f32 %v273, %v253
        %v282 = vadd.f32 %v273, %v254
        %283 = vset.pattern.permute.xlu0 1
        %284 = vperm.xlu0 %283, %v200
        %v285 = vpop.permute.xlu0 %284
        %287 = vset.pattern.permute.xlu0 1
        %288 = vperm.xlu0 %287, %v201
        %v289 = vpop.permute.xlu0 %288
        %291 = vset.pattern.permute.xlu0 1
        %292 = vperm.xlu0 %291, %v202
        %v293 = vpop.permute.xlu0 %292
        %295 = vset.pattern.permute.xlu0 1
        %296 = vperm.xlu0 %295, %v203
        %v297 = vpop.permute.xlu0 %296
        %v299 = vlaneseq
        %v300 = vshrl.u32 %v299, 7
        %v301 = vsub.s32 1, %v300
        %v302 = vrot.slane %v199, %v301
        %v303 = vlaneseq
        %v304 = vshrl.u32 %v303, 7
        %v305 = vsub.s32 5, %v304
        %v306 = vrot.slane %v199, %v305
        %v309 = vlaneseq
        %v310 = vshrl.u32 %v309, 7
        %v311 = vsub.s32 1, %v310
        %v312 = vrot.slane %v302, %v311
        %v313 = vlaneseq
        %v314 = vshrl.u32 %v313, 7
        %v315 = vsub.s32 1, %v314
        %v316 = vrot.slane %v306, %v315
        %v317 = vmul.f32 %v285, %v312
        %v318 = vmul.f32 %v285, %v316
        %v319 = vmul.f32 %v289, %v312
        %v320 = vmul.f32 %v289, %v316
        %v321 = vmul.f32 %v293, %v312
        %v322 = vmul.f32 %v293, %v316
        %v323 = vmul.f32 %v297, %v312
        %v324 = vmul.f32 %v297, %v316
        %v325 = vadd.f32 %v275, %v317
        %v326 = vadd.f32 %v276, %v318
        %v327 = vadd.f32 %v277, %v319
        %v328 = vadd.f32 %v278, %v320
        %v329 = vadd.f32 %v279, %v321
        %v330 = vadd.f32 %v280, %v322
        %v331 = vadd.f32 %v281, %v323
        %v332 = vadd.f32 %v282, %v324
        %333 = vset.pattern.permute.xlu0 2
        %334 = vperm.xlu0 %333, %v200
        %v335 = vpop.permute.xlu0 %334
        %337 = vset.pattern.permute.xlu0 2
        %338 = vperm.xlu0 %337, %v201
        %v339 = vpop.permute.xlu0 %338
        %341 = vset.pattern.permute.xlu0 2
        %342 = vperm.xlu0 %341, %v202
        %v343 = vpop.permute.xlu0 %342
        %345 = vset.pattern.permute.xlu0 2
        %346 = vperm.xlu0 %345, %v203
        %v347 = vpop.permute.xlu0 %346
        %v349 = vlaneseq
        %v350 = vshrl.u32 %v349, 7
        %v351 = vsub.s32 2, %v350
        %v352 = vrot.slane %v199, %v351
        %v353 = vlaneseq
        %v354 = vshrl.u32 %v353, 7
        %v355 = vsub.s32 6, %v354
        %v356 = vrot.slane %v199, %v355
        %v359 = vlaneseq
        %v360 = vshrl.u32 %v359, 7
        %v361 = vsub.s32 2, %v360
        %v362 = vrot.slane %v352, %v361
        %v363 = vlaneseq
        %v364 = vshrl.u32 %v363, 7
        %v365 = vsub.s32 2, %v364
        %v366 = vrot.slane %v356, %v365
        %v367 = vmul.f32 %v335, %v362
        %v368 = vmul.f32 %v335, %v366
        %v369 = vmul.f32 %v339, %v362
        %v370 = vmul.f32 %v339, %v366
        %v371 = vmul.f32 %v343, %v362
        %v372 = vmul.f32 %v343, %v366
        %v373 = vmul.f32 %v347, %v362
        %v374 = vmul.f32 %v347, %v366
        %v375 = vadd.f32 %v325, %v367
        %v376 = vadd.f32 %v326, %v368
        %v377 = vadd.f32 %v327, %v369
        %v378 = vadd.f32 %v328, %v370
        %v379 = vadd.f32 %v329, %v371
        %v380 = vadd.f32 %v330, %v372
        %v381 = vadd.f32 %v331, %v373
        %v382 = vadd.f32 %v332, %v374
        %383 = vset.pattern.permute.xlu0 3
        %384 = vperm.xlu0 %383, %v200
        %v385 = vpop.permute.xlu0 %384
        %387 = vset.pattern.permute.xlu0 3
        %388 = vperm.xlu0 %387, %v201
        %v389 = vpop.permute.xlu0 %388
        %391 = vset.pattern.permute.xlu0 3
        %392 = vperm.xlu0 %391, %v202
        %v393 = vpop.permute.xlu0 %392
        %395 = vset.pattern.permute.xlu0 3
        %396 = vperm.xlu0 %395, %v203
        %v397 = vpop.permute.xlu0 %396
        %v399 = vlaneseq
        %v400 = vshrl.u32 %v399, 7
        %v401 = vsub.s32 3, %v400
        %v402 = vrot.slane %v199, %v401
        %v403 = vlaneseq
        %v404 = vshrl.u32 %v403, 7
        %v405 = vsub.s32 7, %v404
        %v406 = vrot.slane %v199, %v405
        %v409 = vlaneseq
        %v410 = vshrl.u32 %v409, 7
        %v411 = vsub.s32 3, %v410
        %v412 = vrot.slane %v402, %v411
        %v413 = vlaneseq
        %v414 = vshrl.u32 %v413, 7
        %v415 = vsub.s32 3, %v414
        %v416 = vrot.slane %v406, %v415
        %v417 = vmul.f32 %v385, %v412
        %v418 = vmul.f32 %v385, %v416
        %v419 = vmul.f32 %v389, %v412
        %v420 = vmul.f32 %v389, %v416
        %v421 = vmul.f32 %v393, %v412
        %v422 = vmul.f32 %v393, %v416
        %v423 = vmul.f32 %v397, %v412
        %v424 = vmul.f32 %v397, %v416
        %v425 = vadd.f32 %v375, %v417
        %v426 = vadd.f32 %v376, %v418
        %v427 = vadd.f32 %v377, %v419
        %v428 = vadd.f32 %v378, %v420
        %v429 = vadd.f32 %v379, %v421
        %v430 = vadd.f32 %v380, %v422
        %v431 = vadd.f32 %v381, %v423
        %v432 = vadd.f32 %v382, %v424
        %v433 = vtanh.pop %v425
        %v434 = vtanh.pop %v426
        %v435 = vtanh.pop %v427
        %v436 = vtanh.pop %v428
        %v437 = vtanh.pop %v429
        %v438 = vtanh.pop %v430
        %v439 = vtanh.pop %v431
        %v440 = vtanh.pop %v432
        %v441 = vld [vmem:[%s2] sm:$0xff]
        %v442 = vld [vmem:[%s2 + $0x8] sm:$0xff]
        %v443 = vld [vmem:[%s2 + $0x10] sm:$0xff]
        %v444 = vld [vmem:[%s2 + $0x18] sm:$0xff]
        %v445 = vld [vmem:[%s3 + $0x20] sm:$0xff]
        %v446 = vld [vmem:[%s3 + $0x28] sm:$0xff]
        %v447 = vld [vmem:[%s3 + $0x30] sm:$0xff]
        %v448 = vld [vmem:[%s3 + $0x38] sm:$0xff]
        %450 = vset.pattern.permute.xlu0 0
        %451 = vperm.xlu0 %450, %v445
        %v452 = vpop.permute.xlu0 %451
        %455 = vset.pattern.permute.xlu0 0
        %456 = vperm.xlu0 %455, %v446
        %v457 = vpop.permute.xlu0 %456
        %460 = vset.pattern.permute.xlu0 0
        %461 = vperm.xlu0 %460, %v447
        %v462 = vpop.permute.xlu0 %461
        %465 = vset.pattern.permute.xlu0 0
        %466 = vperm.xlu0 %465, %v448
        %v467 = vpop.permute.xlu0 %466
        %vm469 = vcmask 261120
        %v471 = vsel %vm469, %v441, 0
        %v474 = vsel %vm469, %v442, 0
        %v477 = vsel %vm469, %v443, 0
        %v480 = vsel %vm469, %v444, 0
        %482 = vmatprep.subr.mxu0 %v434
        %483 = vmatpush1.msra.mxu0 %v433
        %484 = vmatprep.subr.mxu0 %v436
        %485 = vmatpush1.msra.mxu0 %v435
        %486 = vmatprep.subr.mxu0 %v438
        %487 = vmatpush1.msra.mxu0 %v437
        %488 = vmatprep.subr.mxu0 %v440
        %489 = vmatpush1.msra.mxu0 %v439
        %490 = vmatprep.subr.mxu0 0.0
        %491 = vmatpush1.msra.mxu0 0.0
        %492 = vmatprep.subr.mxu0 0.0
        %493 = vmatpush1.msra.mxu0 0.0
        %494 = vmatprep.subr.mxu0 0.0
        %495 = vmatpush1.msra.mxu0 0.0
        %496 = vmatprep.subr.mxu0 0.0
        %497 = vmatpush1.msra.mxu0 0.0
        %498 = vmatprep.subr.mxu0 0.0
        %499 = vmatpush1.msra.mxu0 0.0
        %500 = vmatprep.subr.mxu0 0.0
        %501 = vmatpush1.msra.mxu0 0.0
        %502 = vmatprep.subr.mxu0 0.0
        %503 = vmatpush1.msra.mxu0 0.0
        %504 = vmatprep.subr.mxu0 0.0
        %505 = vmatpush1.msra.mxu0 0.0
        %506 = vmatprep.subr.mxu0 0.0
        %507 = vmatpush1.msra.mxu0 0.0
        %508 = vmatprep.subr.mxu0 0.0
        %509 = vmatpush1.msra.mxu0 0.0
        %510 = vmatprep.subr.mxu0 0.0
        %511 = vmatpush1.msra.mxu0 0.0
        %512 = vmatprep.subr.mxu0 0.0
        %513 = vmatpush1.msra.mxu0 0.0
        %514 = vmatprep.subr.mxu0 0.0
        %515 = vmatpush1.msra.mxu0 0.0
        %516 = vmatprep.subr.mxu0 0.0
        %517 = vmatpush1.msra.mxu0 0.0
        %518 = vmatprep.subr.mxu0 0.0
        %519 = vmatpush1.msra.mxu0 0.0
        %520 = vmatprep.subr.mxu0 0.0
        %521 = vmatpush1.msra.mxu0 0.0
        %522 = vmatprep.subr.mxu0 0.0
        %523 = vmatpush1.msra.mxu0 0.0
        %524 = vmatprep.subr.mxu0 0.0
        %525 = vmatpush1.msra.mxu0 0.0
        %526 = vmatprep.subr.mxu0 0.0
        %527 = vmatpush1.msra.mxu0 0.0
        %528 = vmatprep.subr.mxu0 0.0
        %529 = vmatpush1.msra.mxu0 0.0
        %530 = vmatprep.subr.mxu0 0.0
        %531 = vmatpush1.msra.mxu0 0.0
        %532 = vmatprep.subr.mxu0 0.0
        %533 = vmatpush1.msra.mxu0 0.0
        %534 = vmatprep.subr.mxu0 0.0
        %535 = vmatpush1.msra.mxu0 0.0
        %536 = vmatprep.subr.mxu0 0.0
        %537 = vmatpush1.msra.mxu0 0.0
        %538 = vmatprep.subr.mxu0 0.0
        %539 = vmatpush1.msra.mxu0 0.0
        %540 = vmatprep.subr.mxu0 0.0
        %541 = vmatpush1.msra.mxu0 0.0
        %542 = vmatprep.subr.mxu0 0.0
        %543 = vmatpush1.msra.mxu0 0.0
        %544 = vmatprep.subr.mxu0 0.0
        %545 = vmatpush1.msra.mxu0 0.0
        %546 = vmatprep.mubr.f32.mxu0 0.0
        %547 = vmatmul.mubr.f32.gmra.mrb[0].mxu0 %v471
        %v548 = vpop.f32.mrb[0].mxu0
        %v549 = vadd.f32 %v452, %v548
        %v550 = vpop.f32.mrb[0].mxu0
        %v551 = vadd.f32 %v452, %v550
        %552 = vmatprep.mubr.f32.mxu0 0.0
        %553 = vmatmul.mubr.f32.gmra.mrb[0].mxu0 %v474
        %v554 = vpop.f32.mrb[0].mxu0
        %v555 = vadd.f32 %v457, %v554
        %v556 = vpop.f32.mrb[0].mxu0
        %v557 = vadd.f32 %v457, %v556
        %558 = vmatprep.mubr.f32.mxu0 0.0
        %559 = vmatmul.mubr.f32.gmra.mrb[0].mxu0 %v477
        %v560 = vpop.f32.mrb[0].mxu0
        %v561 = vadd.f32 %v462, %v560
        %v562 = vpop.f32.mrb[0].mxu0
        %v563 = vadd.f32 %v462, %v562
        %564 = vmatprep.mubr.f32.mxu0 0.0
        %565 = vmatmul.mubr.f32.gmra.mrb[0].mxu0 %v480
        %v566 = vpop.f32.mrb[0].mxu0
        %v567 = vadd.f32 %v467, %v566
        %v568 = vpop.f32.mrb[0].mxu0
        %v569 = vadd.f32 %v467, %v568
        %570 = vdwg.mxu0
        %v571 = vtanh.pop %v549
        %v572 = vtanh.pop %v551
        %v573 = vtanh.pop %v555
        %v574 = vtanh.pop %v557
        %v575 = vtanh.pop %v561
        %v576 = vtanh.pop %v563
        %v577 = vtanh.pop %v567
        %v578 = vtanh.pop %v569
        %v579 = vld [vmem:[%s2 + $0x20] sm:$0xff]
        %v580 = vld [vmem:[%s2 + $0x28] sm:$0xff]
        %v581 = vld [vmem:[%s2 + $0x30] sm:$0xff]
        %v582 = vld [vmem:[%s2 + $0x38] sm:$0xff]
        %v583 = vld [vmem:[%s3 + $0x40] sm:$0xff]
        %v584 = vld [vmem:[%s3 + $0x48] sm:$0xff]
        %v585 = vld [vmem:[%s3 + $0x50] sm:$0xff]
        %v586 = vld [vmem:[%s3 + $0x58] sm:$0xff]
        %588 = vset.pattern.permute.xlu0 0
        %589 = vperm.xlu0 %588, %v583
        %v590 = vpop.permute.xlu0 %589
        %593 = vset.pattern.permute.xlu0 0
        %594 = vperm.xlu0 %593, %v584
        %v595 = vpop.permute.xlu0 %594
        %598 = vset.pattern.permute.xlu0 0
        %599 = vperm.xlu0 %598, %v585
        %v600 = vpop.permute.xlu0 %599
        %603 = vset.pattern.permute.xlu0 0
        %604 = vperm.xlu0 %603, %v586
        %v605 = vpop.permute.xlu0 %604
        %v608 = vsel %vm469, %v579, 0
        %v611 = vsel %vm469, %v580, 0
        %v614 = vsel %vm469, %v581, 0
        %v617 = vsel %vm469, %v582, 0
        %619 = vmatprep.subr.mxu0 %v572
        %620 = vmatpush1.msra.mxu0 %v571
        %621 = vmatprep.subr.mxu0 %v574
        %622 = vmatpush1.msra.mxu0 %v573
        %623 = vmatprep.subr.mxu0 %v576
        %624 = vmatpush1.msra.mxu0 %v575
        %625 = vmatprep.subr.mxu0 %v578
        %626 = vmatpush1.msra.mxu0 %v577
        %627 = vmatprep.subr.mxu0 0.0
        %628 = vmatpush1.msra.mxu0 0.0
        %629 = vmatprep.subr.mxu0 0.0
        %630 = vmatpush1.msra.mxu0 0.0
        %631 = vmatprep.subr.mxu0 0.0
        %632 = vmatpush1.msra.mxu0 0.0
        %633 = vmatprep.subr.mxu0 0.0
        %634 = vmatpush1.msra.mxu0 0.0
        %635 = vmatprep.subr.mxu0 0.0
        %636 = vmatpush1.msra.mxu0 0.0
        %637 = vmatprep.subr.mxu0 0.0
        %638 = vmatpush1.msra.mxu0 0.0
        %639 = vmatprep.subr.mxu0 0.0
        %640 = vmatpush1.msra.mxu0 0.0
        %641 = vmatprep.subr.mxu0 0.0
        %642 = vmatpush1.msra.mxu0 0.0
        %643 = vmatprep.subr.mxu0 0.0
        %644 = vmatpush1.msra.mxu0 0.0
        %645 = vmatprep.subr.mxu0 0.0
        %646 = vmatpush1.msra.mxu0 0.0
        %647 = vmatprep.subr.mxu0 0.0
        %648 = vmatpush1.msra.mxu0 0.0
        %649 = vmatprep.subr.mxu0 0.0
        %650 = vmatpush1.msra.mxu0 0.0
        %651 = vmatprep.subr.mxu0 0.0
        %652 = vmatpush1.msra.mxu0 0.0
        %653 = vmatprep.subr.mxu0 0.0
        %654 = vmatpush1.msra.mxu0 0.0
        %655 = vmatprep.subr.mxu0 0.0
        %656 = vmatpush1.msra.mxu0 0.0
        %657 = vmatprep.subr.mxu0 0.0
        %658 = vmatpush1.msra.mxu0 0.0
        %659 = vmatprep.subr.mxu0 0.0
        %660 = vmatpush1.msra.mxu0 0.0
        %661 = vmatprep.subr.mxu0 0.0
        %662 = vmatpush1.msra.mxu0 0.0
        %663 = vmatprep.subr.mxu0 0.0
        %664 = vmatpush1.msra.mxu0 0.0
        %665 = vmatprep.subr.mxu0 0.0
        %666 = vmatpush1.msra.mxu0 0.0
        %667 = vmatprep.subr.mxu0 0.0
        %668 = vmatpush1.msra.mxu0 0.0
        %669 = vmatprep.subr.mxu0 0.0
        %670 = vmatpush1.msra.mxu0 0.0
        %671 = vmatprep.subr.mxu0 0.0
        %672 = vmatpush1.msra.mxu0 0.0
        %673 = vmatprep.subr.mxu0 0.0
        %674 = vmatpush1.msra.mxu0 0.0
        %675 = vmatprep.subr.mxu0 0.0
        %676 = vmatpush1.msra.mxu0 0.0
        %677 = vmatprep.subr.mxu0 0.0
        %678 = vmatpush1.msra.mxu0 0.0
        %679 = vmatprep.subr.mxu0 0.0
        %680 = vmatpush1.msra.mxu0 0.0
        %681 = vmatprep.subr.mxu0 0.0
        %682 = vmatpush1.msra.mxu0 0.0
        %683 = vmatprep.mubr.f32.mxu0 0.0
        %684 = vmatmul.mubr.f32.gmra.mrb[0].mxu0 %v608
        %v685 = vpop.f32.mrb[0].mxu0
        %v686 = vadd.f32 %v590, %v685
        %v687 = vpop.f32.mrb[0].mxu0
        %v688 = vadd.f32 %v590, %v687
        %689 = vmatprep.mubr.f32.mxu0 0.0
        %690 = vmatmul.mubr.f32.gmra.mrb[0].mxu0 %v611
        %v691 = vpop.f32.mrb[0].mxu0
        %v692 = vadd.f32 %v595, %v691
        %v693 = vpop.f32.mrb[0].mxu0
        %v694 = vadd.f32 %v595, %v693
        %695 = vmatprep.mubr.f32.mxu0 0.0
        %696 = vmatmul.mubr.f32.gmra.mrb[0].mxu0 %v614
        %v697 = vpop.f32.mrb[0].mxu0
        %v698 = vadd.f32 %v600, %v697
        %v699 = vpop.f32.mrb[0].mxu0
        %v700 = vadd.f32 %v600, %v699
        %701 = vmatprep.mubr.f32.mxu0 0.0
        %702 = vmatmul.mubr.f32.gmra.mrb[0].mxu0 %v617
        %v703 = vpop.f32.mrb[0].mxu0
        %v704 = vadd.f32 %v605, %v703
        %v705 = vpop.f32.mrb[0].mxu0
        %v706 = vadd.f32 %v605, %v705
        %707 = vdwg.mxu0
        %v708 = vtanh.pop %v686
        %v709 = vtanh.pop %v688
        %v710 = vtanh.pop %v692
        %v711 = vtanh.pop %v694
        %v712 = vtanh.pop %v698
        %v713 = vtanh.pop %v700
        %v714 = vtanh.pop %v704
        %v715 = vtanh.pop %v706
        %v716 = vld [vmem:[%s2 + $0x40] sm:$0xff]
        %v717 = vld [vmem:[%s2 + $0x48] sm:$0xff]
        %v718 = vld [vmem:[%s2 + $0x50] sm:$0xff]
        %v719 = vld [vmem:[%s2 + $0x58] sm:$0xff]
        %v720 = vld [vmem:[%s2 + $0x60] sm:$0xff]
        %v721 = vld [vmem:[%s2 + $0x68] sm:$0xff]
        %v722 = vld [vmem:[%s2 + $0x70] sm:$0xff]
        %v723 = vld [vmem:[%s2 + $0x78] sm:$0xff]
        %v724 = vld [vmem:[%s2 + $0x80] sm:$0xff]
        %v725 = vld [vmem:[%s2 + $0x88] sm:$0xff]
        %v726 = vld [vmem:[%s2 + $0x90] sm:$0xff]
        %v727 = vld [vmem:[%s2 + $0x98] sm:$0xff]
        %v728 = vld [vmem:[%s2 + $0xa0] sm:$0xff]
        %v729 = vld [vmem:[%s2 + $0xa8] sm:$0xff]
        %v730 = vld [vmem:[%s2 + $0xb0] sm:$0xff]
        %v731 = vld [vmem:[%s2 + $0xb8] sm:$0xff]
        %v732 = vld [vmem:[%s3 + $0x60] sm:$0xff]
        %v733 = vld [vmem:[%s3 + $0x68] sm:$0xff]
        %v734 = vld [vmem:[%s3 + $0x70] sm:$0xff]
        %v735 = vld [vmem:[%s3 + $0x78] sm:$0xff]
        %v736 = vld [vmem:[%s3 + $0x80] sm:$0xff]
        %v737 = vld [vmem:[%s3 + $0x88] sm:$0xff]
        %v738 = vld [vmem:[%s3 + $0x90] sm:$0xff]
        %v739 = vld [vmem:[%s3 + $0x98] sm:$0xff]
        %v740 = vld [vmem:[%s3 + $0xa0] sm:$0xff]
        %v741 = vld [vmem:[%s3 + $0xa8] sm:$0xff]
        %v742 = vld [vmem:[%s3 + $0xb0] sm:$0xff]
        %v743 = vld [vmem:[%s3 + $0xb8] sm:$0xff]
        %v744 = vld [vmem:[%s3 + $0xc0] sm:$0xff]
        %v745 = vld [vmem:[%s3 + $0xc8] sm:$0xff]
        %v746 = vld [vmem:[%s3 + $0xd0] sm:$0xff]
        %v747 = vld [vmem:[%s3 + $0xd8] sm:$0xff]
        %749 = vset.pattern.permute.xlu0 0
        %750 = vperm.xlu0 %749, %v732
        %v751 = vpop.permute.xlu0 %750
        %754 = vset.pattern.permute.xlu0 0
        %755 = vperm.xlu0 %754, %v733
        %v756 = vpop.permute.xlu0 %755
        %759 = vset.pattern.permute.xlu0 0
        %760 = vperm.xlu0 %759, %v734
        %v761 = vpop.permute.xlu0 %760
        %764 = vset.pattern.permute.xlu0 0
        %765 = vperm.xlu0 %764, %v735
        %v766 = vpop.permute.xlu0 %765
        %769 = vset.pattern.permute.xlu0 0
        %770 = vperm.xlu0 %769, %v736
        %v771 = vpop.permute.xlu0 %770
        %774 = vset.pattern.permute.xlu0 0
        %775 = vperm.xlu0 %774, %v737
        %v776 = vpop.permute.xlu0 %775
        %779 = vset.pattern.permute.xlu0 0
        %780 = vperm.xlu0 %779, %v738
        %v781 = vpop.permute.xlu0 %780
        %784 = vset.pattern.permute.xlu0 0
        %785 = vperm.xlu0 %784, %v739
        %v786 = vpop.permute.xlu0 %785
        %789 = vset.pattern.permute.xlu0 0
        %790 = vperm.xlu0 %789, %v740
        %v791 = vpop.permute.xlu0 %790
        %794 = vset.pattern.permute.xlu0 0
        %795 = vperm.xlu0 %794, %v741
        %v796 = vpop.permute.xlu0 %795
        %799 = vset.pattern.permute.xlu0 0
        %800 = vperm.xlu0 %799, %v742
        %v801 = vpop.permute.xlu0 %800
        %804 = vset.pattern.permute.xlu0 0
        %805 = vperm.xlu0 %804, %v743
        %v806 = vpop.permute.xlu0 %805
        %809 = vset.pattern.permute.xlu0 0
        %810 = vperm.xlu0 %809, %v744
        %v811 = vpop.permute.xlu0 %810
        %814 = vset.pattern.permute.xlu0 0
        %815 = vperm.xlu0 %814, %v745
        %v816 = vpop.permute.xlu0 %815
        %819 = vset.pattern.permute.xlu0 0
        %820 = vperm.xlu0 %819, %v746
        %v821 = vpop.permute.xlu0 %820
        %824 = vset.pattern.permute.xlu0 0
        %825 = vperm.xlu0 %824, %v747
        %v826 = vpop.permute.xlu0 %825
        %v829 = vsel %vm469, %v716, 0
        %v832 = vsel %vm469, %v717, 0
        %v835 = vsel %vm469, %v718, 0
        %v838 = vsel %vm469, %v719, 0
        %v841 = vsel %vm469, %v720, 0
        %v844 = vsel %vm469, %v721, 0
        %v847 = vsel %vm469, %v722, 0
        %v850 = vsel %vm469, %v723, 0
        %v853 = vsel %vm469, %v724, 0
        %v856 = vsel %vm469, %v725, 0
        %v859 = vsel %vm469, %v726, 0
        %v862 = vsel %vm469, %v727, 0
        %v865 = vsel %vm469, %v728, 0
        %v868 = vsel %vm469, %v729, 0
        %v871 = vsel %vm469, %v730, 0
        %v874 = vsel %vm469, %v731, 0
        %876 = vmatprep.subr.mxu0 %v709
        %877 = vmatpush1.msra.mxu0 %v708
        %878 = vmatprep.subr.mxu0 %v711
        %879 = vmatpush1.msra.mxu0 %v710
        %880 = vmatprep.subr.mxu0 %v713
        %881 = vmatpush1.msra.mxu0 %v712
        %882 = vmatprep.subr.mxu0 %v715
        %883 = vmatpush1.msra.mxu0 %v714
        %884 = vmatprep.subr.mxu0 0.0
        %885 = vmatpush1.msra.mxu0 0.0
        %886 = vmatprep.subr.mxu0 0.0
        %887 = vmatpush1.msra.mxu0 0.0
        %888 = vmatprep.subr.mxu0 0.0
        %889 = vmatpush1.msra.mxu0 0.0
        %890 = vmatprep.subr.mxu0 0.0
        %891 = vmatpush1.msra.mxu0 0.0
        %892 = vmatprep.subr.mxu0 0.0
        %893 = vmatpush1.msra.mxu0 0.0
        %894 = vmatprep.subr.mxu0 0.0
        %895 = vmatpush1.msra.mxu0 0.0
        %896 = vmatprep.subr.mxu0 0.0
        %897 = vmatpush1.msra.mxu0 0.0
        %898 = vmatprep.subr.mxu0 0.0
        %899 = vmatpush1.msra.mxu0 0.0
        %900 = vmatprep.subr.mxu0 0.0
        %901 = vmatpush1.msra.mxu0 0.0
        %902 = vmatprep.subr.mxu0 0.0
        %903 = vmatpush1.msra.mxu0 0.0
        %904 = vmatprep.subr.mxu0 0.0
        %905 = vmatpush1.msra.mxu0 0.0
        %906 = vmatprep.subr.mxu0 0.0
        %907 = vmatpush1.msra.mxu0 0.0
        %908 = vmatprep.subr.mxu0 0.0
        %909 = vmatpush1.msra.mxu0 0.0
        %910 = vmatprep.subr.mxu0 0.0
        %911 = vmatpush1.msra.mxu0 0.0
        %912 = vmatprep.subr.mxu0 0.0
        %913 = vmatpush1.msra.mxu0 0.0
        %914 = vmatprep.subr.mxu0 0.0
        %915 = vmatpush1.msra.mxu0 0.0
        %916 = vmatprep.subr.mxu0 0.0
        %917 = vmatpush1.msra.mxu0 0.0
        %918 = vmatprep.subr.mxu0 0.0
        %919 = vmatpush1.msra.mxu0 0.0
        %920 = vmatprep.subr.mxu0 0.0
        %921 = vmatpush1.msra.mxu0 0.0
        %922 = vmatprep.subr.mxu0 0.0
        %923 = vmatpush1.msra.mxu0 0.0
        %924 = vmatprep.subr.mxu0 0.0
        %925 = vmatpush1.msra.mxu0 0.0
        %926 = vmatprep.subr.mxu0 0.0
        %927 = vmatpush1.msra.mxu0 0.0
        %928 = vmatprep.subr.mxu0 0.0
        %929 = vmatpush1.msra.mxu0 0.0
        %930 = vmatprep.subr.mxu0 0.0
        %931 = vmatpush1.msra.mxu0 0.0
        %932 = vmatprep.subr.mxu0 0.0
        %933 = vmatpush1.msra.mxu0 0.0
        %934 = vmatprep.subr.mxu0 0.0
        %935 = vmatpush1.msra.mxu0 0.0
        %936 = vmatprep.subr.mxu0 0.0
        %937 = vmatpush1.msra.mxu0 0.0
        %938 = vmatprep.subr.mxu0 0.0
        %939 = vmatpush1.msra.mxu0 0.0
        %940 = vmatprep.mubr.f32.mxu0 0.0
        %941 = vmatmul.mubr.f32.gmra.mrb[0].mxu0 %v829
        %v942 = vpop.f32.mrb[0].mxu0
        %v943 = vadd.f32 %v751, %v942
        %v944 = vpop.f32.mrb[0].mxu0
        %v945 = vadd.f32 %v751, %v944
        %946 = vmatprep.mubr.f32.mxu0 0.0
        %947 = vmatmul.mubr.f32.gmra.mrb[0].mxu0 %v832
        %v948 = vpop.f32.mrb[0].mxu0
        %v949 = vadd.f32 %v756, %v948
        %v950 = vpop.f32.mrb[0].mxu0
        %v951 = vadd.f32 %v756, %v950
        %952 = vmatprep.mubr.f32.mxu0 0.0
        %953 = vmatmul.mubr.f32.gmra.mrb[0].mxu0 %v835
        %v954 = vpop.f32.mrb[0].mxu0
        %v955 = vadd.f32 %v761, %v954
        %v956 = vpop.f32.mrb[0].mxu0
        %v957 = vadd.f32 %v761, %v956
        %958 = vmatprep.mubr.f32.mxu0 0.0
        %959 = vmatmul.mubr.f32.gmra.mrb[0].mxu0 %v838
        %v960 = vpop.f32.mrb[0].mxu0
        %v961 = vadd.f32 %v766, %v960
        %v962 = vpop.f32.mrb[0].mxu0
        %v963 = vadd.f32 %v766, %v962
        %964 = vmatprep.mubr.f32.mxu0 0.0
        %965 = vmatmul.mubr.f32.gmra.mrb[0].mxu0 %v841
        %v966 = vpop.f32.mrb[0].mxu0
        %v967 = vadd.f32 %v771, %v966
        %v968 = vpop.f32.mrb[0].mxu0
        %v969 = vadd.f32 %v771, %v968
        %970 = vmatprep.mubr.f32.mxu0 0.0
        %971 = vmatmul.mubr.f32.gmra.mrb[0].mxu0 %v844
        %v972 = vpop.f32.mrb[0].mxu0
        %v973 = vadd.f32 %v776, %v972
        %v974 = vpop.f32.mrb[0].mxu0
        %v975 = vadd.f32 %v776, %v974
        %976 = vmatprep.mubr.f32.mxu0 0.0
        %977 = vmatmul.mubr.f32.gmra.mrb[0].mxu0 %v847
        %v978 = vpop.f32.mrb[0].mxu0
        %v979 = vadd.f32 %v781, %v978
        %v980 = vpop.f32.mrb[0].mxu0
        %v981 = vadd.f32 %v781, %v980
        %982 = vmatprep.mubr.f32.mxu0 0.0
        %983 = vmatmul.mubr.f32.gmra.mrb[0].mxu0 %v850
        %v984 = vpop.f32.mrb[0].mxu0
        %v985 = vadd.f32 %v786, %v984
        %v986 = vpop.f32.mrb[0].mxu0
        %v987 = vadd.f32 %v786, %v986
        %988 = vmatprep.mubr.f32.mxu0 0.0
        %989 = vmatmul.mubr.f32.gmra.mrb[0].mxu0 %v853
        %v990 = vpop.f32.mrb[0].mxu0
        %v991 = vadd.f32 %v791, %v990
        %v992 = vpop.f32.mrb[0].mxu0
        %v993 = vadd.f32 %v791, %v992
        %994 = vmatprep.mubr.f32.mxu0 0.0
        %995 = vmatmul.mubr.f32.gmra.mrb[0].mxu0 %v856
        %v996 = vpop.f32.mrb[0].mxu0
        %v997 = vadd.f32 %v796, %v996
        %v998 = vpop.f32.mrb[0].mxu0
        %v999 = vadd.f32 %v796, %v998
        %1000 = vmatprep.mubr.f32.mxu0 0.0
        %1001 = vmatmul.mubr.f32.gmra.mrb[0].mxu0 %v859
        %v1002 = vpop.f32.mrb[0].mxu0
        %v1003 = vadd.f32 %v801, %v1002
        %v1004 = vpop.f32.mrb[0].mxu0
        %v1005 = vadd.f32 %v801, %v1004
        %1006 = vmatprep.mubr.f32.mxu0 0.0
        %1007 = vmatmul.mubr.f32.gmra.mrb[0].mxu0 %v862
        %v1008 = vpop.f32.mrb[0].mxu0
        %v1009 = vadd.f32 %v806, %v1008
        %v1010 = vpop.f32.mrb[0].mxu0
        %v1011 = vadd.f32 %v806, %v1010
        %1012 = vmatprep.mubr.f32.mxu0 0.0
        %1013 = vmatmul.mubr.f32.gmra.mrb[0].mxu0 %v865
        %v1014 = vpop.f32.mrb[0].mxu0
        %v1015 = vadd.f32 %v811, %v1014
        %v1016 = vpop.f32.mrb[0].mxu0
        %v1017 = vadd.f32 %v811, %v1016
        %1018 = vmatprep.mubr.f32.mxu0 0.0
        %1019 = vmatmul.mubr.f32.gmra.mrb[0].mxu0 %v868
        %v1020 = vpop.f32.mrb[0].mxu0
        %v1021 = vadd.f32 %v816, %v1020
        %v1022 = vpop.f32.mrb[0].mxu0
        %v1023 = vadd.f32 %v816, %v1022
        %1024 = vmatprep.mubr.f32.mxu0 0.0
        %1025 = vmatmul.mubr.f32.gmra.mrb[0].mxu0 %v871
        %v1026 = vpop.f32.mrb[0].mxu0
        %v1027 = vadd.f32 %v821, %v1026
        %v1028 = vpop.f32.mrb[0].mxu0
        %v1029 = vadd.f32 %v821, %v1028
        %1030 = vmatprep.mubr.f32.mxu0 0.0
        %1031 = vmatmul.mubr.f32.gmra.mrb[0].mxu0 %v874
        %v1032 = vpop.f32.mrb[0].mxu0
        %v1033 = vadd.f32 %v826, %v1032
        %v1034 = vpop.f32.mrb[0].mxu0
        %v1035 = vadd.f32 %v826, %v1034
        %1036 = vdwg.mxu0
        %v1037 = vmul.f32 %v943, %v991
        %v1038 = vmul.f32 %v945, %v993
        %v1039 = vmul.f32 %v949, %v997
        %v1040 = vmul.f32 %v951, %v999
        %v1041 = vmul.f32 %v955, %v1003
        %v1042 = vmul.f32 %v957, %v1005
        %v1043 = vmul.f32 %v961, %v1009
        %v1044 = vmul.f32 %v963, %v1011
        %v1045 = vmul.f32 %v967, %v1015
        %v1046 = vmul.f32 %v969, %v1017
        %v1047 = vmul.f32 %v973, %v1021
        %v1048 = vmul.f32 %v975, %v1023
        %v1049 = vmul.f32 %v979, %v1027
        %v1050 = vmul.f32 %v981, %v1029
        %v1051 = vmul.f32 %v985, %v1033
        %v1052 = vmul.f32 %v987, %v1035
        %v1053 = vadd.f32 %v1037, %v1041
        %v1054 = vadd.f32 %v1038, %v1042
        %v1055 = vadd.f32 %v1039, %v1043
        %v1056 = vadd.f32 %v1040, %v1044
        %v1057 = vadd.f32 %v1053, %v1045
        %v1058 = vadd.f32 %v1054, %v1046
        %v1059 = vadd.f32 %v1055, %v1047
        %v1060 = vadd.f32 %v1056, %v1048
        %v1061 = vadd.f32 %v1057, %v1049
        %v1062 = vadd.f32 %v1058, %v1050
        %v1063 = vadd.f32 %v1059, %v1051
        %v1064 = vadd.f32 %v1060, %v1052
        %v1065 = vld [vmem:[%s3 + $0xe0] sm:$0xff]
        %v1066 = vld [vmem:[%s3 + $0xe8] sm:$0xff]
        %1068 = vset.pattern.permute.xlu0 0
        %1069 = vperm.xlu0 %1068, %v1065
        %v1070 = vpop.permute.xlu0 %1069
        %1073 = vset.pattern.permute.xlu0 0
        %1074 = vperm.xlu0 %1073, %v1066
        %v1075 = vpop.permute.xlu0 %1074
        %v1077 = vadd.f32 %v1061, %v1070
        %v1078 = vadd.f32 %v1062, %v1070
        %v1079 = vadd.f32 %v1063, %v1075
        %v1080 = vadd.f32 %v1064, %v1075
        %1081 = vst [vmem:[%s191] sm:$0xff] %v1077
        %1082 = vst [vmem:[%s191 + $0x8] sm:$0xff] %v1078
        %1083 = vst [vmem:[%s191 + $0x10] sm:$0xff] %v1079
        %1084 = vst [vmem:[%s191 + $0x18] sm:$0xff] %v1080
        %s1085 = sand.u32 %s115, 1
        %s1086 = scalar_lea.sflag [#allocation3], %s1085
        %s1087 = sand.u32 %s115, 1
        %s1088 = smul.addr %s1087, 32
        %s1089 = scalar_lea.vmem [#allocation2], %s1088
        // Predicated region
        $region37: #{tpu_custom_call.1} parent=35 // pred_check
          %p1090 = pneg %p125
        $region38: #{tpu_custom_call.1} parent=35 // pred_check_branch
          %1092 = sbr.rel (%p1090) target = $region40
        $region39: #{tpu_custom_call.1} parent=35 // pred_region
          %s1093 = smul.u32 2, %s18
          %s1095 = ssub.s32 512, 512
          %1096 = vsyncadd %s1086, %s1095
          %s1097 = smul.addr %s1093, 128
          %s1098 = scalar_lea.hbm %s4, %s1097
          %s1099 = sshll.u32 %s1089, 4
          %s1100 = int_to_ptr.vmem [resolvable:$true] %s1099
          %1105 = dma.vmem_to_hbm [thread:$0]  %s1100, 512, %s1098, %s1086, 256, 512, 16
        $region40: #{tpu_custom_call.1} parent=35 // pred_fallthru
          _
      $region36: #{tpu_custom_call.1} parent=5 // pred_fallthru
        _
      %p1106 = scmp.le.s32.totalorder 2, %s13
      // Predicated region
      $region41: #{tpu_custom_call.1} parent=5 // pred_check
        %p1107 = pneg %p1106
      $region42: #{tpu_custom_call.1} parent=5 // pred_check_branch
        %1109 = sbr.rel (%p1107) target = $region44
      $region43: #{tpu_custom_call.1} parent=5 // pred_region
        %s1110 = ssub.s32 %s13, 2
        // Predicated region
        $region45: #{tpu_custom_call.1} parent=43 // pred_check
          %p1111 = pneg %p131
        $region46: #{tpu_custom_call.1} parent=43 // pred_check_branch
          %1113 = sbr.rel (%p1111) target = $region48
        $region47: #{tpu_custom_call.1} parent=43 // pred_region
          %s1114 = sand.u32 %s116, 1
          %s1115 = scalar_lea.sflag [#allocation3], %s1114
          %s1116 = sand.u32 %s116, 1
          %s1117 = smul.addr %s1116, 32
          %s1118 = scalar_lea.vmem [#allocation2], %s1117
          %1119 = dma.done %s1115, 512
        $region48: #{tpu_custom_call.1} parent=43 // pred_fallthru
          _
      $region44: #{tpu_custom_call.1} parent=5 // pred_fallthru
        _
    $region6: #{tpu_custom_call.1} parent=1 // loop_footer
      %s17 = sadd.s32 1, %s13
    $region7: #{tpu_custom_call.1} parent=1 // loop_footer_branch
      %12 = sbr.rel target = $region3
    $region8: #{tpu_custom_call.1} parent=1 // loop_exit
      _
    %1120 = vsyncpa [#allocation3], 1
    %s1121 = scalar_lea.sflag [#allocation3], 1
    %1122 = vsyncpa %s1121, 1

</llo_original>
